<compile_context>
chip_gen: v7x
topology: tpu7x:2x2x1
jax: 0.10.0
libtpu: 0.0.40
codegen_flags: <defaults>
</compile_context>

<pallas_src>
import math
import numpy as np
import jax
import jax.numpy as jnp
from jax.experimental import pallas as pl
from jax.experimental.pallas import tpu as pltpu  # noqa: F401  (kept for TPU-specific tuning)


def message_passing_kernel(feat_ref, w_ref, selscale_ref, out_ref):
    """Single-invocation body (whole problem fits in VMEM).

    feat_ref     : (N*L, E)   f32   features flattened row-major over (i, l)
    w_ref        : (E, E)     bf16  weight matrix
    selscale_ref : (N*L, N*L) f32   scaled one-hot selector:
                   S[j*L+l, i*L+l] = rsqrt(d_{i*(j,l)} * d_j(l)) iff i == i*(j,l)
    out_ref      : (N*L, E)   f32   ret flattened row-major over (j, l)
    """
    # m[r, :] = W @ feature[r, :]  ==  feat @ W.T : one MXU matmul over all
    # (node, layer) rows at once; bf16 inputs, f32 accumulation.
    m = jax.lax.dot_general(
        feat_ref[...].astype(jnp.bfloat16), w_ref[...],
        dimension_numbers=(((1,), (1,)), ((), ())),
        preferred_element_type=jnp.float32)                       # (N*L, E)

    # Fused gather + degree scaling: exactly one nonzero per selector row
    # (the rsqrt(d_i* d_j) factor at column i*(j,l)*L + l), so this f32 matmul
    # is an exact scaled row-gather. At N*L = 32 this is cheaper and
    # layout-friendlier than a dynamic gather.
    # TODO(synk): for large N*L replace the O((NL)^2*E) one-hot matmul with a
    # true gather (i* in SMEM via scalar prefetch + per-row DMA / jnp.take).
    out_ref[...] = jax.lax.dot_general(
        selscale_ref[...], m,
        dimension_numbers=(((1,), (0,)), ((), ())),
        preferred_element_type=jnp.float32).astype(out_ref.dtype)


def _adj_preprocess(adj):
    """Adjacency-only work hoisted out of the kernel (amortises across calls)."""
    L, N, _ = adj.shape
    deg = jnp.sum(adj, axis=-1) + 1.0                             # (L, i): d_i
    ii = jax.lax.broadcasted_iota(jnp.int32, (L, N, N), 1)        # source i
    jj = jax.lax.broadcasted_iota(jnp.int32, (L, N, N), 2)        # dest   j
    mask = (adj > 0.5) | (ii == jj)                               # robust vs ==1.0
    i_star = jnp.max(jnp.where(mask, ii, -1), axis=1)             # (L, j)
    d_src = jnp.take_along_axis(deg, i_star, axis=1)              # (L, j): d_i*
    scale = jax.lax.rsqrt(d_src * deg)                            # (L, j)
    onehot = (i_star[:, :, None] ==
              jnp.arange(N, dtype=jnp.int32)[None, None, :])      # (L, j, i)
    sel = onehot.astype(jnp.float32) * scale[:, :, None]          # (L, j, i)
    eye_l = jnp.eye(L, dtype=jnp.float32)
    # S[j*L+l, i*L+l'] = sel[l, j, i] * (l == l')   (block-"diagonal" over layers)
    selscale = jnp.einsum('lji,lm->jlim', sel, eye_l).reshape(N * L, N * L)
    return selscale


def message_passing(feature, W, adj):
    N, L, E = feature.shape
    selscale = _adj_preprocess(adj)                               # (N*L, N*L) f32
    feat_flat = feature.reshape(N * L, E)                         # row = i*L + l
    w_bf16 = W.astype(jnp.bfloat16)

    out_flat = pl.pallas_call(
        message_passing_kernel,
        out_shape=jax.ShapeDtypeStruct((N * L, E), jnp.float32),
        # No grid / default BlockSpecs: every operand is a single whole-array
        # VMEM block; one grid step, no pipelining overhead.
    )(feat_flat, w_bf16, selscale)
    return out_flat.reshape(N, L, E)


def reference_forward(feature, W, adj):
    """Direct transcription of MessagePassing.forward (python loops)."""
    N, L, E = feature.shape
    ret = np.zeros_like(feature)
    nodes = adj.shape[1]
    for i in range(nodes):
        for l in range(L):
            N_i = adj[l, i, :]
            js = [j for j in range(N_i.shape[0]) if N_i[j] == 1] + [i]
            d_i = np.sum(adj[l, i, :]) + 1
            for j in js:
                d_j = np.sum(adj[l, j, :]) + 1
                ret[j, l, :] = (W @ feature[i, l, :]) / math.sqrt(d_i * d_j)
    return ret


if __name__ == "__main__":
    # Small synthetic problem consistent with the module:
    #   nodes N = 8, layers L = 4, feature width (nelem) E = 128
    N, L, E = 8, 4, 128
    key = jax.random.PRNGKey(0)
    k_feat, k_w, k_adj = jax.random.split(key, 3)

    feature = jax.random.uniform(k_feat, (N, L, E), dtype=jnp.float32)
    W = jax.random.uniform(k_w, (E, E), dtype=jnp.float32)
    # binary adjacency (L, N, N), zero diagonal (self-edge added implicitly)
    adj = (jax.random.uniform(k_adj, (L, N, N)) < 0.4).astype(jnp.float32)
    adj = adj * (1.0 - jnp.eye(N, dtype=jnp.float32)[None, :, :])

    mp = jax.jit(message_passing)
    out = jax.block_until_ready(mp(feature, W, adj))

    ref = reference_forward(np.asarray(feature, dtype=np.float32),
                            np.asarray(W, dtype=np.float32),
                            np.asarray(adj, dtype=np.float32))
    np.testing.assert_allclose(np.asarray(out), ref, rtol=2e-2, atol=2e-2)

    print("KERNEL_OK")
</pallas_src>

<mosaic_0001>
module attributes {stable_mosaic.version = 11 : i64} {
  func.func @message_passing_kernel(%arg0: memref<32x128xf32, #tpu.memory_space<vmem>>, %arg1: memref<128x128xbf16, #tpu.memory_space<vmem>>, %arg2: memref<32x32xf32, #tpu.memory_space<vmem>>, %arg3: memref<32x128xf32, #tpu.memory_space<vmem>>) attributes {dimension_semantics = [], scalar_prefetch = 0 : i64, scratch_operands = 0 : i64, tpu.core_type = #tpu.core_type<tc>} {
    %c0 = arith.constant 0 : index
    %c0_0 = arith.constant 0 : index
    %0 = vector.load %arg0[%c0, %c0_0] : memref<32x128xf32, #tpu.memory_space<vmem>>, vector<32x128xf32>
    %1 = arith.truncf %0 : vector<32x128xf32> to vector<32x128xbf16>
    %c0_1 = arith.constant 0 : index
    %c0_2 = arith.constant 0 : index
    %2 = vector.load %arg1[%c0_1, %c0_2] : memref<128x128xbf16, #tpu.memory_space<vmem>>, vector<128x128xbf16>
    %cst = arith.constant dense<0.000000e+00> : vector<32x128xf32>
    %3 = tpu.matmul %1, %2, %cst {dimension_numbers = #tpu.dot_dimension_numbers<[1], [1], [0], [0], [0, 0, 1, 0], [], []>} : vector<32x128xbf16>, vector<128x128xbf16>, vector<32x128xf32> -> vector<32x128xf32>
    %c0_3 = arith.constant 0 : index
    %c0_4 = arith.constant 0 : index
    %4 = vector.load %arg2[%c0_3, %c0_4] : memref<32x32xf32, #tpu.memory_space<vmem>>, vector<32x32xf32>
    %cst_5 = arith.constant dense<0.000000e+00> : vector<32x128xf32>
    %5 = tpu.matmul %4, %3, %cst_5 {dimension_numbers = #tpu.dot_dimension_numbers<[1], [0], [0], [1], [0, 0, 1, 1], [], []>} : vector<32x32xf32>, vector<32x128xf32>, vector<32x128xf32> -> vector<32x128xf32>
    %c0_6 = arith.constant 0 : index
    %c0_7 = arith.constant 0 : index
    %6 = vector.load %arg3[%c0_6, %c0_7] : memref<32x128xf32, #tpu.memory_space<vmem>>, vector<32x128xf32>
    tpu.vector_store %arg3[%c0_6, %c0_7], %5 {strides = array<i32>} : memref<32x128xf32, #tpu.memory_space<vmem>>, vector<32x128xf32>,
    return
  }
}

</mosaic_0001>

<llo_original>
// kernel: message_passing.1
$region0: #{message_passing.1}
  #allocation0 [shape = 'u32[]', space=smem, size = 0x4, offset = 0x4, fixed_abs, tag = 'smem constant byte address 0x4 - core index']
  #allocation1 [shape = 'u32[144,128]{1,0:T(1,128)}', space=vmem, size = 0x12000, scoped, tag = 'internal scratch']
  %s0 = inlined_call_operand.vmem [shape: f32[32,128], index: 0, kind: input, shape index: {}]
  %s1 = inlined_call_operand.vmem [shape: bf16[128,128], index: 1, kind: input, shape index: {}]
  %s2 = inlined_call_operand.vmem [shape: f32[32,32], index: 2, kind: input, shape index: {}]
  %s3 = inlined_call_operand.hbm [shape: f32[32,128], index: 3, kind: output, shape index: {}]
  %s4 = sld [smem:[#allocation0]]
  $region22: #{message_passing.1} parent=0
    _
  %s6 = ssub.s32 1, %s4
  %s7 = scalar_select 0, %s6, %s4
  $region1: #{message_passing.1} parent=0
    #allocation2 [shape = 'u8[16384]{0}', space=vmem, size = 0x4000, scoped, tag = 'output window, operand 0, single buffered']
    #allocation3 [shape = 's32[1]{0}', space=sflag, size = 0x4, scoped, tag = 'scoped memory for message_passing.1']
    %8 = vsyncpa [#allocation3], 0
    // Predicated region
    $region2: #{message_passing.1} parent=1 // pred_check
      _
    $region3: #{message_passing.1} parent=1 // pred_check_branch
      %10 = sbr.rel (0) target = $region5
    $region4: #{message_passing.1} parent=1 // pred_region
      _
    $region5: #{message_passing.1} parent=1 // pred_fallthru
      _
    // Predicated region
    $region6: #{message_passing.1} parent=1 // pred_check
      _
    $region7: #{message_passing.1} parent=1 // pred_check_branch
      %12 = sbr.rel (0) target = $region9
    $region8: #{message_passing.1} parent=1 // pred_region
      _
    $region9: #{message_passing.1} parent=1 // pred_fallthru
      _
    // Predicated region
    $region10: #{message_passing.1} parent=1 // pred_check
      _
    $region11: #{message_passing.1} parent=1 // pred_check_branch
      %14 = sbr.rel (0) target = $region13
    $region12: #{message_passing.1} parent=1 // pred_region
      _
    $region13: #{message_passing.1} parent=1 // pred_fallthru
      _
    %v16 = vld [vmem:[%s0] sm:$0xff]
    %v17 = vld [vmem:[%s0 + $0x8] sm:$0xff]
    %v18 = vld [vmem:[%s0 + $0x10] sm:$0xff]
    %v19 = vld [vmem:[%s0 + $0x18] sm:$0xff]
    %v20 = vpack.c.bf16 %v17, %v16
    %v21 = vpack.c.bf16 %v19, %v18
    %v22 = vld [vmem:[%s1] sm:$0xf]
    %v23 = vld [vmem:[%s1 + $0x4] sm:$0xf]
    %v24 = vld [vmem:[%s1 + $0x8] sm:$0xf]
    %v25 = vld [vmem:[%s1 + $0xc] sm:$0xf]
    %v26 = vld [vmem:[%s1 + $0x10] sm:$0xf]
    %v27 = vld [vmem:[%s1 + $0x14] sm:$0xf]
    %v28 = vld [vmem:[%s1 + $0x18] sm:$0xf]
    %v29 = vld [vmem:[%s1 + $0x1c] sm:$0xf]
    %v30 = vld [vmem:[%s1 + $0x20] sm:$0xf]
    %v31 = vld [vmem:[%s1 + $0x24] sm:$0xf]
    %v32 = vld [vmem:[%s1 + $0x28] sm:$0xf]
    %v33 = vld [vmem:[%s1 + $0x2c] sm:$0xf]
    %v34 = vld [vmem:[%s1 + $0x30] sm:$0xf]
    %v35 = vld [vmem:[%s1 + $0x34] sm:$0xf]
    %v36 = vld [vmem:[%s1 + $0x38] sm:$0xf]
    %v37 = vld [vmem:[%s1 + $0x3c] sm:$0xf]
    %v54 = vunpack.c.l.b16 %v22
    %v55 = vunpack.c.l.b16 %v23
    %v56 = vunpack.c.l.b16 %v24
    %v57 = vunpack.c.l.b16 %v25
    %v58 = vunpack.c.l.b16 %v26
    %v59 = vunpack.c.l.b16 %v27
    %v60 = vunpack.c.l.b16 %v28
    %v61 = vunpack.c.l.b16 %v29
    %v62 = vunpack.c.l.b16 %v30
    %v63 = vunpack.c.l.b16 %v31
    %v64 = vunpack.c.l.b16 %v32
    %v65 = vunpack.c.l.b16 %v33
    %v66 = vunpack.c.l.b16 %v34
    %v67 = vunpack.c.l.b16 %v35
    %v68 = vunpack.c.l.b16 %v36
    %v69 = vunpack.c.l.b16 %v37
    %v70 = vpack.c.b16 %v55, %v54
    %v71 = vpack.c.b16 %v57, %v56
    %v72 = vpack.c.b16 %v59, %v58
    %v73 = vpack.c.b16 %v61, %v60
    %v74 = vpack.c.b16 %v63, %v62
    %v75 = vpack.c.b16 %v65, %v64
    %v76 = vpack.c.b16 %v67, %v66
    %v77 = vpack.c.b16 %v69, %v68
    %86 = vmatprep.subr.bf16.mxu0 0
    %87 = vmatpush1.bf16.xpose.msra.mxu0 %v70
    %88 = vmatprep.subr.bf16.mxu0 0
    %89 = vmatpush1.bf16.xpose.msra.mxu0 %v71
    %90 = vmatprep.subr.bf16.mxu0 0
    %91 = vmatpush1.bf16.xpose.msra.mxu0 %v72
    %92 = vmatprep.subr.bf16.mxu0 0
    %93 = vmatpush1.bf16.xpose.msra.mxu0 %v73
    %94 = vmatprep.subr.bf16.mxu0 0
    %95 = vmatpush1.bf16.xpose.msra.mxu0 %v74
    %96 = vmatprep.subr.bf16.mxu0 0
    %97 = vmatpush1.bf16.xpose.msra.mxu0 %v75
    %98 = vmatprep.subr.bf16.mxu0 0
    %99 = vmatpush1.bf16.xpose.msra.mxu0 %v76
    %100 = vmatprep.subr.bf16.mxu0 0
    %101 = vmatpush1.bf16.xpose.msra.mxu0 %v77
    %102 = vmatprep.subr.bf16.mxu0 0
    %103 = vmatpush1.bf16.xpose.msra.mxu0 0
    %104 = vmatprep.subr.bf16.mxu0 0
    %105 = vmatpush1.bf16.xpose.msra.mxu0 0
    %106 = vmatprep.subr.bf16.mxu0 0
    %107 = vmatpush1.bf16.xpose.msra.mxu0 0
    %108 = vmatprep.subr.bf16.mxu0 0
    %109 = vmatpush1.bf16.xpose.msra.mxu0 0
    %110 = vmatprep.subr.bf16.mxu0 0
    %111 = vmatpush1.bf16.xpose.msra.mxu0 0
    %112 = vmatprep.subr.bf16.mxu0 0
    %113 = vmatpush1.bf16.xpose.msra.mxu0 0
    %114 = vmatprep.subr.bf16.mxu0 0
    %115 = vmatpush1.bf16.xpose.msra.mxu0 0
    %116 = vmatprep.subr.bf16.mxu0 0
    %117 = vmatpush1.bf16.xpose.msra.mxu0 0
    %118 = vmatprep.mubr.bf16.mxu0 0
    %119 = vmatmul.mubr.bf16.gmra.mrb[0].mxu0 %v20
    %v120 = vpop.f32.mrb[0].mxu0
    %v121 = vadd.f32 0.0, %v120
    %v122 = vpop.f32.mrb[0].mxu0
    %v123 = vpop.f32.mrb[0].mxu0
    %v124 = vadd.f32 0.0, %v123
    %v125 = vpop.f32.mrb[0].mxu0
    %126 = vmatprep.mubr.bf16.mxu0 0
    %127 = vmatmul.mubr.bf16.gmra.mrb[0].mxu0 %v21
    %v128 = vpop.f32.mrb[0].mxu0
    %v129 = vadd.f32 0.0, %v128
    %v130 = vpop.f32.mrb[0].mxu0
    %v131 = vpop.f32.mrb[0].mxu0
    %v132 = vadd.f32 0.0, %v131
    %v133 = vpop.f32.mrb[0].mxu0
    %134 = vdwg.mxu0
    %v135 = vld [vmem:[%s2] sm:$0xff]
    %v136 = vld [vmem:[%s2 + $0x8] sm:$0xff]
    %v137 = vld [vmem:[%s2 + $0x10] sm:$0xff]
    %v138 = vld [vmem:[%s2 + $0x18] sm:$0xff]
    %vm139 = vcmask 261120
    %v141 = vsel %vm139, %v135, 0
    %v144 = vsel %vm139, %v136, 0
    %v147 = vsel %vm139, %v137, 0
    %v150 = vsel %vm139, %v138, 0
    %152 = vmatprep.subr.mxu0 0.0
    %153 = vmatpush1.msra.mxu0 %v121
    %154 = vmatprep.subr.mxu0 0.0
    %155 = vmatpush1.msra.mxu0 %v124
    %156 = vmatprep.subr.mxu0 0.0
    %157 = vmatpush1.msra.mxu0 %v129
    %158 = vmatprep.subr.mxu0 0.0
    %159 = vmatpush1.msra.mxu0 %v132
    %160 = vmatprep.subr.mxu0 0.0
    %161 = vmatpush1.msra.mxu0 0.0
    %162 = vmatprep.subr.mxu0 0.0
    %163 = vmatpush1.msra.mxu0 0.0
    %164 = vmatprep.subr.mxu0 0.0
    %165 = vmatpush1.msra.mxu0 0.0
    %166 = vmatprep.subr.mxu0 0.0
    %167 = vmatpush1.msra.mxu0 0.0
    %168 = vmatprep.subr.mxu0 0.0
    %169 = vmatpush1.msra.mxu0 0.0
    %170 = vmatprep.subr.mxu0 0.0
    %171 = vmatpush1.msra.mxu0 0.0
    %172 = vmatprep.subr.mxu0 0.0
    %173 = vmatpush1.msra.mxu0 0.0
    %174 = vmatprep.subr.mxu0 0.0
    %175 = vmatpush1.msra.mxu0 0.0
    %176 = vmatprep.subr.mxu0 0.0
    %177 = vmatpush1.msra.mxu0 0.0
    %178 = vmatprep.subr.mxu0 0.0
    %179 = vmatpush1.msra.mxu0 0.0
    %180 = vmatprep.subr.mxu0 0.0
    %181 = vmatpush1.msra.mxu0 0.0
    %182 = vmatprep.subr.mxu0 0.0
    %183 = vmatpush1.msra.mxu0 0.0
    %184 = vmatprep.subr.mxu0 0.0
    %185 = vmatpush1.msra.mxu0 0.0
    %186 = vmatprep.subr.mxu0 0.0
    %187 = vmatpush1.msra.mxu0 0.0
    %188 = vmatprep.subr.mxu0 0.0
    %189 = vmatpush1.msra.mxu0 0.0
    %190 = vmatprep.subr.mxu0 0.0
    %191 = vmatpush1.msra.mxu0 0.0
    %192 = vmatprep.subr.mxu0 0.0
    %193 = vmatpush1.msra.mxu0 0.0
    %194 = vmatprep.subr.mxu0 0.0
    %195 = vmatpush1.msra.mxu0 0.0
    %196 = vmatprep.subr.mxu0 0.0
    %197 = vmatpush1.msra.mxu0 0.0
    %198 = vmatprep.subr.mxu0 0.0
    %199 = vmatpush1.msra.mxu0 0.0
    %200 = vmatprep.subr.mxu0 0.0
    %201 = vmatpush1.msra.mxu0 0.0
    %202 = vmatprep.subr.mxu0 0.0
    %203 = vmatpush1.msra.mxu0 0.0
    %204 = vmatprep.subr.mxu0 0.0
    %205 = vmatpush1.msra.mxu0 0.0
    %206 = vmatprep.subr.mxu0 0.0
    %207 = vmatpush1.msra.mxu0 0.0
    %208 = vmatprep.subr.mxu0 0.0
    %209 = vmatpush1.msra.mxu0 0.0
    %210 = vmatprep.subr.mxu0 0.0
    %211 = vmatpush1.msra.mxu0 0.0
    %212 = vmatprep.subr.mxu0 0.0
    %213 = vmatpush1.msra.mxu0 0.0
    %214 = vmatprep.subr.mxu0 0.0
    %215 = vmatpush1.msra.mxu0 0.0
    %216 = vmatprep.mubr.f32.mxu0 0.0
    %217 = vmatmul.mubr.f32.gmra.mrb[0].mxu0 %v141
    %v218 = vpop.f32.mrb[0].mxu0
    %v219 = vadd.f32 0.0, %v218
    %v220 = vpop.f32.mrb[0].mxu0
    %221 = vmatprep.mubr.f32.mxu0 0.0
    %222 = vmatmul.mubr.f32.gmra.mrb[0].mxu0 %v144
    %v223 = vpop.f32.mrb[0].mxu0
    %v224 = vadd.f32 0.0, %v223
    %v225 = vpop.f32.mrb[0].mxu0
    %226 = vmatprep.mubr.f32.mxu0 0.0
    %227 = vmatmul.mubr.f32.gmra.mrb[0].mxu0 %v147
    %v228 = vpop.f32.mrb[0].mxu0
    %v229 = vadd.f32 0.0, %v228
    %v230 = vpop.f32.mrb[0].mxu0
    %231 = vmatprep.mubr.f32.mxu0 0.0
    %232 = vmatmul.mubr.f32.gmra.mrb[0].mxu0 %v150
    %v233 = vpop.f32.mrb[0].mxu0
    %v234 = vadd.f32 0.0, %v233
    %v235 = vpop.f32.mrb[0].mxu0
    %236 = vdwg.mxu0
    %237 = vst [vmem:[#allocation2] sm:$0xff] %v219
    %238 = vst [vmem:[#allocation2 + $0x8] sm:$0xff] %v224
    %239 = vst [vmem:[#allocation2 + $0x10] sm:$0xff] %v229
    %240 = vst [vmem:[#allocation2 + $0x18] sm:$0xff] %v234
    // Predicated region
    $region14: #{message_passing.1} parent=1 // pred_check
      _
    $region15: #{message_passing.1} parent=1 // pred_check_branch
      %242 = sbr.rel (0) target = $region17
    $region16: #{message_passing.1} parent=1 // pred_region
      %s244 = ssub.s32 512, 512
      %245 = vsyncadd [#allocation3], %s244
      %s246 = sshll.u32 [#allocation2], 4
      %s247 = int_to_ptr.vmem [resolvable:$true] %s246
      %252 = dma.vmem_to_hbm [thread:$0]  %s247, 512, %s3, [#allocation3], 128, 128, 8
    $region17: #{message_passing.1} parent=1 // pred_fallthru
      _
    // Predicated region
    $region18: #{message_passing.1} parent=1 // pred_check
      _
    $region19: #{message_passing.1} parent=1 // pred_check_branch
      %254 = sbr.rel (0) target = $region21
    $region20: #{message_passing.1} parent=1 // pred_region
      %255 = dma.done [#allocation3], 512
    $region21: #{message_passing.1} parent=1 // pred_fallthru
      _
    %256 = vsyncpa [#allocation3], 1

</llo_original>
